<compile_context>
chip_gen: v5e
topology: v5e:2x2
jax: 0.10.0
libtpu: 0.0.40
codegen_flags: <defaults>
</compile_context>

<pallas_src>
import functools

import jax
import jax.numpy as jnp
from jax.experimental import pallas as pl
from jax.experimental.pallas import tpu as pltpu


def _gelu_tanh(x):
    # tanh-approximate GELU (EUP tanh; avoids erf lowering).
    c = 0.7978845608028654  # sqrt(2/pi)
    return 0.5 * x * (1.0 + jnp.tanh(c * (x + 0.044715 * x * x * x)))


_ACTS = {
    "gelu": _gelu_tanh,
    "relu": lambda x: jnp.maximum(x, 0.0),
    "tanh": jnp.tanh,
    "swish": lambda x: x * jax.nn.sigmoid(x),
}

# Activations whose tail hits the EUP (for the cost-estimate hint).
_TRANSCENDENTAL_ACTS = ("gelu", "tanh", "swish")


def _round_up(a, b):
    return ((a + b - 1) // b) * b


def _linear_act_kernel(x_ref, w_ref, *rest, act_fn, has_bias):
    # x_ref: [tm, K];  w_ref: [tn, K] (torch nn.Linear layout, NOT transposed)
    # b_ref: [1, tn] (optional);      o_ref: [tm, tn]
    if has_bias:
        b_ref, o_ref = rest
    else:
        (o_ref,) = rest
    # Contract on W's last dim -> x @ W.T on the MXU with f32 accumulation.
    y = jax.lax.dot_general(
        x_ref[...], w_ref[...],
        dimension_numbers=(((1,), (1,)), ((), ())),
        preferred_element_type=jnp.float32)
    if has_bias:
        y = y + b_ref[...].astype(jnp.float32)   # biased activation: act(b + xW^T)
    o_ref[...] = act_fn(y).astype(o_ref.dtype)


def linear_activation(x, weight, bias=None, act="gelu", *,
                      block_m=256, block_n=None, compute_dtype=None,
                      out_dtype=None, vmem_limit_bytes=None):
    """Fused y = act(x @ weight.T + bias)  (LinearActivation.forward).

    x:       [..., in_features]
    weight:  [out_features, in_features]   (torch layout; never transposed in HBM)
    bias:    [out_features] or None
    compute_dtype: optional matmul-input dtype (e.g. jnp.bfloat16) — halves
             HBM/VMEM traffic; accumulation / bias / activation stay f32.
    block_n: optional out_features tile (multiple of 128) for large weights.
    """
    if out_dtype is None:
        out_dtype = x.dtype
    act_fn = _ACTS[act] if isinstance(act, str) else act
    has_bias = bias is not None

    n, k = weight.shape
    assert x.shape[-1] == k, (x.shape, weight.shape)
    lead_shape = x.shape[:-1]
    m = 1
    for d in lead_shape:
        m *= d
    x2 = x.reshape(m, k)

    if compute_dtype is not None:
        x2 = x2.astype(compute_dtype)
        weight = weight.astype(compute_dtype)

    # --- N: pad weight/bias once to a multiple of 128 so output stores are
    # always lane-dense (demo N=512 -> no-op).
    n_pad = _round_up(n, 128)
    if n_pad != n:
        weight = jnp.pad(weight, ((0, n_pad - n), (0, 0)))
    if has_bias:
        b = bias.reshape(1, n).astype(jnp.float32)
        if n_pad != n:
            b = jnp.pad(b, ((0, 0), (0, n_pad - n)))

    # --- N tiling (only needed when the whole weight would blow VMEM).
    if block_n is None or block_n >= n_pad:
        tn = n_pad
    else:
        tn = min(_round_up(block_n, 128), n_pad)
    n_tiles = pl.cdiv(n_pad, tn)

    # --- M tiling: no input padding / output slicing; Pallas handles the
    # ragged last row block.
    tm = min(block_m, m)
    # Keep >= 2 row tiles when N isn't split, so both v7x TCs get work.
    if n_tiles == 1 and m > 8 and pl.cdiv(m, tm) < 2:
        tm = _round_up(pl.cdiv(m, 2), 8)
    if tm < m:
        tm = _round_up(tm, 8)          # (8,128) sublane alignment for partial blocks
    else:
        tm = m                         # full-extent block is always legal
    m_tiles = pl.cdiv(m, tm)

    # Weight / bias blocks never change when N is untiled -> single buffer
    # (half the VMEM of default double buffering), DMA'd exactly once.
    resident_mode = pl.Buffered(1) if n_tiles == 1 else None

    def _resident_spec(shape, index_map):
        if resident_mode is None:
            return pl.BlockSpec(shape, index_map)
        return pl.BlockSpec(shape, index_map, pipeline_mode=resident_mode)

    in_specs = [
        pl.BlockSpec((tm, k), lambda j, i: (i, 0)),        # x row tile
        _resident_spec((tn, k), lambda j, i: (j, 0)),      # weight (torch layout)
    ]
    operands = [x2, weight]
    if has_bias:
        in_specs.append(_resident_spec((1, tn), lambda j, i: (0, j)))
        operands.append(b)

    kernel = functools.partial(_linear_act_kernel, act_fn=act_fn,
                               has_bias=has_bias)

    cost = pl.CostEstimate(
        flops=2 * m * k * n_pad,
        transcendentals=(m * n_pad
                         if (not isinstance(act, str)) or act in _TRANSCENDENTAL_ACTS
                         else 0),
        bytes_accessed=(x2.size * x2.dtype.itemsize
                        + weight.size * weight.dtype.itemsize
                        + (b.size * b.dtype.itemsize if has_bias else 0)
                        + m * n_pad * jnp.dtype(out_dtype).itemsize),
    )

    cp_kwargs = dict(dimension_semantics=("parallel", "parallel"))
    if vmem_limit_bytes is not None:
        cp_kwargs["vmem_limit_bytes"] = vmem_limit_bytes

    out = pl.pallas_call(
        kernel,
        out_shape=jax.ShapeDtypeStruct((m, n_pad), out_dtype),
        grid=(n_tiles, m_tiles),   # N outer: weight stays resident across inner M loop
        in_specs=in_specs,
        out_specs=pl.BlockSpec((tm, tn), lambda j, i: (i, j)),
        compiler_params=pltpu.CompilerParams(**cp_kwargs),
        cost_estimate=cost,
    )(*operands)

    if n_pad != n:
        out = out[:, :n]
    return out.reshape(*lead_shape, n)


def _reference(x, weight, bias, act="gelu"):
    y = jnp.matmul(x, weight.T, precision=jax.lax.Precision.HIGHEST)
    if bias is not None:
        y = y + bias
    if act == "gelu":
        return jax.nn.gelu(y, approximate=False)   # torch F.gelu (exact erf)
    if act == "relu":
        return jnp.maximum(y, 0.0)
    if act == "tanh":
        return jnp.tanh(y)
    if act == "swish":
        return y * jax.nn.sigmoid(y)
    raise ValueError(act)


if __name__ == "__main__":
    key = jax.random.PRNGKey(0)
    k1, k2, k3 = jax.random.split(key, 3)

    # Small BERT-like shapes: 2 sentences x 128 tokens, hidden 128 -> 512.
    batch, seq = 2, 128
    in_features, out_features = 128, 512

    x = jax.random.normal(k1, (batch, seq, in_features), dtype=jnp.float32)
    bound = 1.0 / (in_features ** 0.5)
    weight = jax.random.uniform(k2, (out_features, in_features),
                                jnp.float32, -bound, bound)
    bias = jax.random.uniform(k3, (out_features,), jnp.float32, -bound, bound)

    # 1) Module default: bias + gelu, f32 compute.
    out = linear_activation(x, weight, bias, act="gelu")
    jax.block_until_ready(out)
    ref = _reference(x, weight, bias, act="gelu")
    assert out.shape == (batch, seq, out_features)
    # Tolerance covers tanh-vs-erf GELU approximation (~3e-4 abs max).
    assert jnp.allclose(out, ref, atol=2e-3, rtol=2e-3), "gelu mismatch vs reference"

    # 2) bias=None + relu path (kernel variant without a bias ref).
    out_r = linear_activation(x, weight, None, act="relu")
    jax.block_until_ready(out_r)
    ref_r = _reference(x, weight, None, act="relu")
    assert jnp.allclose(out_r, ref_r, atol=2e-3, rtol=2e-3), "relu mismatch vs reference"

    # 3) bf16 compute path (halved HBM traffic / native MXU path); f32 accumulate.
    out_b = linear_activation(x, weight, bias, act="gelu",
                              compute_dtype=jnp.bfloat16)
    jax.block_until_ready(out_b)
    assert jnp.allclose(out_b.astype(jnp.float32), ref, atol=1e-1, rtol=1e-1), \
        "bf16-compute mismatch vs reference"

    print("KERNEL_OK")
</pallas_src>

<mosaic_0001>
module attributes {stable_mosaic.version = 11 : i64} {
  func.func @_linear_act_kernel(%arg0: i32, %arg1: i32, %arg2: memref<128x128xf32, #tpu.memory_space<vmem>>, %arg3: memref<512x128xf32, #tpu.memory_space<vmem>>, %arg4: memref<1x512xf32, #tpu.memory_space<vmem>>, %arg5: memref<128x512xf32, #tpu.memory_space<vmem>>) attributes {dimension_semantics = [#tpu.dimension_semantics<parallel>, #tpu.dimension_semantics<parallel>], iteration_bounds = array<i64: 1, 2>, scalar_prefetch = 0 : i64, scratch_operands = 0 : i64, tpu.core_type = #tpu.core_type<tc>, window_params = [{transform_indices = @transform_0, window_bounds = array<i64: 128, 128>}, {pipeline_mode = #tpu.pipeline_mode<synchronous>, transform_indices = @transform_1, window_bounds = array<i64: 512, 128>}, {pipeline_mode = #tpu.pipeline_mode<synchronous>, transform_indices = @transform_2, window_bounds = array<i64: 1, 512>}, {transform_indices = @transform_3, window_bounds = array<i64: 128, 512>}]} {
    %c0 = arith.constant 0 : index
    %c0_0 = arith.constant 0 : index
    %0 = vector.load %arg2[%c0, %c0_0] : memref<128x128xf32, #tpu.memory_space<vmem>>, vector<128x128xf32>
    %c0_1 = arith.constant 0 : index
    %c0_2 = arith.constant 0 : index
    %1 = vector.load %arg3[%c0_1, %c0_2] : memref<512x128xf32, #tpu.memory_space<vmem>>, vector<512x128xf32>
    %cst = arith.constant dense<0.000000e+00> : vector<128x512xf32>
    %2 = tpu.matmul %0, %1, %cst {dimension_numbers = #tpu.dot_dimension_numbers<[1], [1], [0], [0], [0, 0, 1, 0], [], []>} : vector<128x128xf32>, vector<512x128xf32>, vector<128x512xf32> -> vector<128x512xf32>
    %c0_3 = arith.constant 0 : index
    %c0_4 = arith.constant 0 : index
    %3 = vector.load %arg4[%c0_3, %c0_4] : memref<1x512xf32, #tpu.memory_space<vmem>>, vector<1x512xf32>
    %4 = vector.broadcast %3 : vector<1x512xf32> to vector<128x512xf32>
    %5 = arith.addf %2, %4 : vector<128x512xf32>
    %cst_5 = arith.constant 5.000000e-01 : f32
    %6 = vector.broadcast %cst_5 : f32 to vector<128x512xf32>
    %7 = arith.mulf %6, %5 : vector<128x512xf32>
    %cst_6 = arith.constant 4.471500e-02 : f32
    %8 = vector.broadcast %cst_6 : f32 to vector<128x512xf32>
    %9 = arith.mulf %8, %5 : vector<128x512xf32>
    %10 = arith.mulf %9, %5 : vector<128x512xf32>
    %11 = arith.mulf %10, %5 : vector<128x512xf32>
    %12 = arith.addf %5, %11 : vector<128x512xf32>
    %cst_7 = arith.constant 0.797884583 : f32
    %13 = vector.broadcast %cst_7 : f32 to vector<128x512xf32>
    %14 = arith.mulf %13, %12 : vector<128x512xf32>
    %15 = math.tanh %14 : vector<128x512xf32>
    %cst_8 = arith.constant 1.000000e+00 : f32
    %16 = vector.broadcast %cst_8 : f32 to vector<128x512xf32>
    %17 = arith.addf %16, %15 : vector<128x512xf32>
    %18 = arith.mulf %7, %17 : vector<128x512xf32>
    %c0_9 = arith.constant 0 : index
    %c0_10 = arith.constant 0 : index
    %19 = vector.load %arg5[%c0_9, %c0_10] : memref<128x512xf32, #tpu.memory_space<vmem>>, vector<128x512xf32>
    tpu.vector_store %arg5[%c0_9, %c0_10], %18 {strides = array<i32>} : memref<128x512xf32, #tpu.memory_space<vmem>>, vector<128x512xf32>,
    return
  }
  func.func @transform_0(%arg0: i32, %arg1: i32) -> (i32, i32) {
    %c0_i32 = arith.constant 0 : i32
    %c0_i32_0 = arith.constant 0 : i32
    return %arg1, %c0_i32 : i32, i32
  }
  func.func @transform_1(%arg0: i32, %arg1: i32) -> (i32, i32) {
    %c0_i32 = arith.constant 0 : i32
    %c0_i32_0 = arith.constant 0 : i32
    return %arg0, %c0_i32 : i32, i32
  }
  func.func @transform_2(%arg0: i32, %arg1: i32) -> (i32, i32) {
    %c0_i32 = arith.constant 0 : i32
    %c0_i32_0 = arith.constant 0 : i32
    return %c0_i32, %arg0 : i32, i32
  }
  func.func @transform_3(%arg0: i32, %arg1: i32) -> (i32, i32) {
    %c0_i32 = arith.constant 0 : i32
    return %arg1, %arg0 : i32, i32
  }
}

</mosaic_0001>

<llo_original>
// kernel: tpu_custom_call.1
$region0: #{tpu_custom_call.1}
  #allocation0 [shape = 'u32[]', space=smem, size = 0x4, offset = 0x4, fixed_abs, tag = 'smem constant byte address 0x4 - core index']
  #allocation1 [shape = 'u32[72,128]{1,0:T(1,128)}', space=vmem, size = 0x9000, scoped, tag = 'internal scratch']
  %s0 = inlined_call_operand.hbm [shape: f32[256,128], index: 0, kind: input, shape index: {}]
  %s1 = inlined_call_operand.hbm [shape: f32[512,128], index: 1, kind: input, shape index: {}]
  %s2 = inlined_call_operand.hbm [shape: f32[1,512], index: 2, kind: input, shape index: {}]
  %s3 = inlined_call_operand.hbm [shape: f32[256,512], index: 3, kind: output, shape index: {}]
  %s4 = sld [smem:[#allocation0]]
  $region57: #{tpu_custom_call.1} parent=0
    _
  %s6 = ssub.s32 1, %s4
  %s7 = scalar_select 0, %s6, %s4
  $region1: #{tpu_custom_call.1} parent=0
    #allocation2 [shape = 'u8[131072]{0}', space=vmem, size = 0x20000, scoped, tag = 'input window, operand 0']
    #allocation3 [shape = 's32[2]{0}', space=sflag, size = 0x8, scoped, tag = 'scoped memory for tpu_custom_call.1']
    #allocation4 [shape = 's32[2]{0}', space=sflag, size = 0x8, scoped, tag = 'scoped memory for tpu_custom_call.1']
    #allocation5 [shape = 'u8[262144]{0}', space=vmem, size = 0x40000, scoped, tag = 'input window, operand 1, single buffered']
    #allocation6 [shape = 's32[1]{0}', space=sflag, size = 0x4, scoped, tag = 'scoped memory for tpu_custom_call.1']
    #allocation7 [shape = 'u8[2048]{0}', space=vmem, size = 0x800, scoped, tag = 'input window, operand 2, single buffered']
    #allocation8 [shape = 'u8[524288]{0}', space=vmem, size = 0x80000, scoped, tag = 'output window, operand 0']
    %8 = vsyncpa [#allocation3], 0
    %s9 = scalar_lea.sflag [#allocation3], 1
    %10 = vsyncpa %s9, 0
    %11 = vsyncpa [#allocation6], 0
    %12 = vsyncpa [#allocation4], 0
    %s13 = scalar_lea.sflag [#allocation4], 1
    %14 = vsyncpa %s13, 0
    loop: start=0, step=1, limit=4
    $region2: #{tpu_custom_call.1} parent=1 // loop_pre_header
      _
    $region3: #{tpu_custom_call.1} parent=1 // loop_header
      %s16 = sphi 0, %s20
      %p17 = scmp.ge.s32.totalorder %s16, 4
      %s23 = sphi 0, %s35
      %s24 = sphi 0, %s31
      %s25 = sphi 0, %s23
      %s26 = sphi 0, %s24
      %s27 = sphi 0, %s25
      %s28 = sphi 0, %s26
      %s38 = sphi 0, %s40
      %s41 = sphi 0, %s38
      %s42 = sphi 0, %s41
      %s58 = sphi 0, %s42
      %s64 = sphi 0, %s66
      %s67 = sphi 0, %s64
      %s68 = sphi 0, %s67
      %s84 = sphi 0, %s68
      %s90 = sphi 0, %s92
      %s93 = sphi 0, %s90
      %s94 = sphi 0, %s93
      %s110 = sphi 0, %s94
      %s118 = sphi 0, %s120
      %s121 = sphi 0, %s118
      %s122 = sphi 0, %s121
      %s138 = sphi 0, %s122
    $region4: #{tpu_custom_call.1} parent=1 // loop_header_branch
      %19 = sbr.rel (%p17) target = $region8
    $region5: #{tpu_custom_call.1} parent=1 // loop_body
      %s21 = ssub.s32 %s16, 1
      %s22 = ssub.s32 %s16, 2
      %s29 = sadd.s32 1, %s24
      %p30 = scmp.ge.s32.totalorder %s29, 2
      %s31 = scalar_select %p30, 0, %s29
      %s32 = sadd.s32 1, %s23
      %s33 = scalar_select %p30, %s32, %s23
      %p34 = scmp.ge.s32.totalorder %s33, 1
      %s35 = scalar_select %p34, 0, %s33
      %s36 = ssub.s32 %s24, %s31
      %p37 = scmp.eq.s32.totalorder %s36, 0
      %s39 = sadd.s32 %s38, 1
      %s40 = scalar_select %p37, %s38, %s39
      %p43 = pneg %p37
      %p44 = scmp.eq.s32.totalorder %s16, 1
      %p45 = por %p43, %p44
      %p46 = scmp.ne.s32.totalorder %s38, %s41
      %p47 = scmp.eq.s32.totalorder %s16, 0
      %p48 = por %p46, %p47
      %p49 = scmp.ne.s32.totalorder %s38, %s41
      %p50 = scmp.eq.s32.totalorder %s21, 1
      %p51 = por %p49, %p50
      %p52 = scmp.ne.s32.totalorder %s41, %s42
      %p53 = scmp.eq.s32.totalorder %s21, 0
      %p54 = por %p52, %p53
      %p55 = scmp.ne.s32.totalorder %s41, %s42
      %p56 = scmp.eq.s32.totalorder %s22, 1
      %p57 = por %p55, %p56
      %p59 = scmp.ne.s32.totalorder %s42, %s58
      %p60 = scmp.eq.s32.totalorder %s22, 0
      %p61 = por %p59, %p60
      %s62 = ssub.s32 %s23, %s35
      %p63 = scmp.eq.s32.totalorder %s62, 0
      %s65 = sadd.s32 %s64, 1
      %s66 = scalar_select %p63, %s64, %s65
      %p69 = pneg %p63
      %p70 = scmp.eq.s32.totalorder %s16, 1
      %p71 = por %p69, %p70
      %p72 = scmp.ne.s32.totalorder %s64, %s67
      %p73 = scmp.eq.s32.totalorder %s16, 0
      %p74 = por %p72, %p73
      %p75 = scmp.ne.s32.totalorder %s64, %s67
      %p76 = scmp.eq.s32.totalorder %s21, 1
      %p77 = por %p75, %p76
      %p78 = scmp.ne.s32.totalorder %s67, %s68
      %p79 = scmp.eq.s32.totalorder %s21, 0
      %p80 = por %p78, %p79
      %p81 = scmp.ne.s32.totalorder %s67, %s68
      %p82 = scmp.eq.s32.totalorder %s22, 1
      %p83 = por %p81, %p82
      %p85 = scmp.ne.s32.totalorder %s68, %s84
      %p86 = scmp.eq.s32.totalorder %s22, 0
      %p87 = por %p85, %p86
      %s88 = ssub.s32 %s23, %s35
      %p89 = scmp.eq.s32.totalorder %s88, 0
      %s91 = sadd.s32 %s90, 1
      %s92 = scalar_select %p89, %s90, %s91
      %p95 = pneg %p89
      %p96 = scmp.eq.s32.totalorder %s16, 1
      %p97 = por %p95, %p96
      %p98 = scmp.ne.s32.totalorder %s90, %s93
      %p99 = scmp.eq.s32.totalorder %s16, 0
      %p100 = por %p98, %p99
      %p101 = scmp.ne.s32.totalorder %s90, %s93
      %p102 = scmp.eq.s32.totalorder %s21, 1
      %p103 = por %p101, %p102
      %p104 = scmp.ne.s32.totalorder %s93, %s94
      %p105 = scmp.eq.s32.totalorder %s21, 0
      %p106 = por %p104, %p105
      %p107 = scmp.ne.s32.totalorder %s93, %s94
      %p108 = scmp.eq.s32.totalorder %s22, 1
      %p109 = por %p107, %p108
      %p111 = scmp.ne.s32.totalorder %s94, %s110
      %p112 = scmp.eq.s32.totalorder %s22, 0
      %p113 = por %p111, %p112
      %s114 = ssub.s32 %s24, %s31
      %s115 = ssub.s32 %s23, %s35
      %s116 = sor.u32 %s114, %s115
      %p117 = scmp.eq.s32.totalorder %s116, 0
      %s119 = sadd.s32 %s118, 1
      %s120 = scalar_select %p117, %s118, %s119
      %p123 = pneg %p117
      %p124 = scmp.eq.s32.totalorder %s16, 1
      %p125 = por %p123, %p124
      %p126 = scmp.ne.s32.totalorder %s118, %s121
      %p127 = scmp.eq.s32.totalorder %s16, 0
      %p128 = por %p126, %p127
      %p129 = scmp.ne.s32.totalorder %s118, %s121
      %p130 = scmp.eq.s32.totalorder %s21, 1
      %p131 = por %p129, %p130
      %p132 = scmp.ne.s32.totalorder %s121, %s122
      %p133 = scmp.eq.s32.totalorder %s21, 0
      %p134 = por %p132, %p133
      %p135 = scmp.ne.s32.totalorder %s121, %s122
      %p136 = scmp.eq.s32.totalorder %s22, 1
      %p137 = por %p135, %p136
      %p139 = scmp.ne.s32.totalorder %s122, %s138
      %p140 = scmp.eq.s32.totalorder %s22, 0
      %p141 = por %p139, %p140
      %p142 = scmp.le.s32.totalorder 1, %s16
      %p143 = scmp.lt.s32.totalorder %s16, 3
      %p144 = pnand %p142, %p143
      %p145 = pneg %p144
      // Predicated region
      $region9: #{tpu_custom_call.1} parent=5 // pred_check
        _
      $region10: #{tpu_custom_call.1} parent=5 // pred_check_branch
        %147 = sbr.rel (%p144) target = $region12
      $region11: #{tpu_custom_call.1} parent=5 // pred_region
        %s148 = ssub.s32 %s16, 1
        // Predicated region
        $region13: #{tpu_custom_call.1} parent=11 // pred_check
          %p149 = pneg %p80
        $region14: #{tpu_custom_call.1} parent=11 // pred_check_branch
          %151 = sbr.rel (%p149) target = $region16
        $region15: #{tpu_custom_call.1} parent=11 // pred_region
          %s152 = smul.u32 64, %s25
          %154 = vsyncadd [#allocation6], 0
          %s155 = smul.addr %s152, 8
          %s156 = scalar_lea.hbm %s1, %s155
          %s157 = sshll.u32 %s156, 4
          %s158 = int_to_ptr.hbm [resolvable:$true] %s157
          %s159 = sshll.u32 [#allocation5], 4
          %s160 = int_to_ptr.vmem [resolvable:$true] %s159
          %165 = dma.hbm_to_vmem [thread:$0]  %s158, 8192, %s160, [#allocation6], 128, 128, 8
        $region16: #{tpu_custom_call.1} parent=11 // pred_fallthru
          _
        // Predicated region
        $region17: #{tpu_custom_call.1} parent=11 // pred_check
          %p166 = pneg %p106
        $region18: #{tpu_custom_call.1} parent=11 // pred_check_branch
          %168 = sbr.rel (%p166) target = $region20
        $region19: #{tpu_custom_call.1} parent=11 // pred_region
          %s169 = smul.u32 4, %s25
          %171 = vsyncadd [#allocation6], 0
          %s172 = scalar_lea.hbm %s2, %s169
          %s174 = sshll.u32 %s172, 4
          %s175 = int_to_ptr.hbm [resolvable:$true] %s174
          %s176 = sshll.u32 [#allocation7], 4
          %s177 = int_to_ptr.vmem [resolvable:$true] %s176
          %179 = dma.hbm_to_vmem [thread:$0]  %s175, 64, %s177, [#allocation6]
        $region20: #{tpu_custom_call.1} parent=11 // pred_fallthru
          _
      $region12: #{tpu_custom_call.1} parent=5 // pred_fallthru
        _
      %p180 = scmp.lt.s32.totalorder %s16, 2
      // Predicated region
      $region21: #{tpu_custom_call.1} parent=5 // pred_check
        %p181 = pneg %p180
      $region22: #{tpu_custom_call.1} parent=5 // pred_check_branch
        %183 = sbr.rel (%p181) target = $region24
      $region23: #{tpu_custom_call.1} parent=5 // pred_region
        // Predicated region
        $region25: #{tpu_custom_call.1} parent=23 // pred_check
          %p184 = pneg %p48
        $region26: #{tpu_custom_call.1} parent=23 // pred_check_branch
          %186 = sbr.rel (%p184) target = $region28
        $region27: #{tpu_custom_call.1} parent=23 // pred_region
          %s187 = sand.u32 %s38, 1
          %s188 = scalar_lea.sflag [#allocation3], %s187
          %s189 = sand.u32 %s38, 1
          %s190 = smul.addr %s189, 128
          %s191 = scalar_lea.vmem [#allocation2], %s190
          %s192 = smul.u32 16, %s24
          %194 = vsyncadd %s188, 0
          %s195 = smul.addr %s192, 8
          %s196 = scalar_lea.hbm %s0, %s195
          %s197 = sshll.u32 %s196, 4
          %s198 = int_to_ptr.hbm [resolvable:$true] %s197
          %s199 = sshll.u32 %s191, 4
          %s200 = int_to_ptr.vmem [resolvable:$true] %s199
          %205 = dma.hbm_to_vmem [thread:$0]  %s198, 2048, %s200, %s188, 128, 128, 8
        $region28: #{tpu_custom_call.1} parent=23 // pred_fallthru
          _
      $region24: #{tpu_custom_call.1} parent=5 // pred_fallthru
        _
      %p206 = scmp.le.s32.totalorder 1, %s16
      %p207 = scmp.lt.s32.totalorder %s16, 3
      %p208 = pnand %p206, %p207
      %p209 = pneg %p208
      // Predicated region
      $region29: #{tpu_custom_call.1} parent=5 // pred_check
        _
      $region30: #{tpu_custom_call.1} parent=5 // pred_check_branch
        %211 = sbr.rel (%p208) target = $region32
      $region31: #{tpu_custom_call.1} parent=5 // pred_region
        %s212 = ssub.s32 %s16, 1
        %s213 = sand.u32 %s41, 1
        %s214 = scalar_lea.sflag [#allocation3], %s213
        %s215 = sand.u32 %s41, 1
        %s216 = smul.addr %s215, 128
        %s217 = scalar_lea.vmem [#allocation2], %s216
        // Predicated region
        $region33: #{tpu_custom_call.1} parent=31 // pred_check
          %p218 = pneg %p54
        $region34: #{tpu_custom_call.1} parent=31 // pred_check_branch
          %220 = sbr.rel (%p218) target = $region36
        $region35: #{tpu_custom_call.1} parent=31 // pred_region
          %222 = dma.done %s214, 2048
        $region36: #{tpu_custom_call.1} parent=31 // pred_fallthru
          _
        // Predicated region
        $region37: #{tpu_custom_call.1} parent=31 // pred_check
          %p223 = pneg %p80
        $region38: #{tpu_custom_call.1} parent=31 // pred_check_branch
          %225 = sbr.rel (%p223) target = $region40
        $region39: #{tpu_custom_call.1} parent=31 // pred_region
          %227 = dma.done [#allocation6], 8192
        $region40: #{tpu_custom_call.1} parent=31 // pred_fallthru
          _
        // Predicated region
        $region41: #{tpu_custom_call.1} parent=31 // pred_check
          %p228 = pneg %p106
        $region42: #{tpu_custom_call.1} parent=31 // pred_check_branch
          %230 = sbr.rel (%p228) target = $region44
        $region43: #{tpu_custom_call.1} parent=31 // pred_region
          %232 = dma.done [#allocation6], 64
        $region44: #{tpu_custom_call.1} parent=31 // pred_fallthru
          _
        %s233 = sand.u32 %s41, 1
        %s234 = scalar_lea.sflag [#allocation3], %s233
        %s235 = sand.u32 %s41, 1
        %s236 = smul.addr %s235, 128
        %s237 = scalar_lea.vmem [#allocation2], %s236
        %p238 = pneg %p54
        %p239 = pneg %p51
        %p240 = pneg %p80
        %p241 = pneg %p77
        %p242 = pneg %p106
        %p243 = pneg %p103
        %p244 = pneg %p134
        %p245 = pneg %p131
        %s246 = sand.u32 %s121, 1
        %s247 = scalar_lea.sflag [#allocation4], %s246
        %s248 = sand.u32 %s121, 1
        %s249 = smul.addr %s248, 512
        %s250 = scalar_lea.vmem [#allocation8], %s249
        %s251 = smul.u32 16, %s26
        %s252 = smul.u32 64, %s25
        %s253 = smul.u32 4, %s25
        %s254 = smul.u32 16, %s26
        %s255 = smul.u32 4, %s25
        %v256 = vld [vmem:[%s217] sm:$0xff]
        %v257 = vld [vmem:[%s217 + $0x8] sm:$0xff]
        %v258 = vld [vmem:[%s217 + $0x10] sm:$0xff]
        %v259 = vld [vmem:[%s217 + $0x18] sm:$0xff]
        %v260 = vld [vmem:[%s217 + $0x20] sm:$0xff]
        %v261 = vld [vmem:[%s217 + $0x28] sm:$0xff]
        %v262 = vld [vmem:[%s217 + $0x30] sm:$0xff]
        %v263 = vld [vmem:[%s217 + $0x38] sm:$0xff]
        %v264 = vld [vmem:[%s217 + $0x40] sm:$0xff]
        %v265 = vld [vmem:[%s217 + $0x48] sm:$0xff]
        %v266 = vld [vmem:[%s217 + $0x50] sm:$0xff]
        %v267 = vld [vmem:[%s217 + $0x58] sm:$0xff]
        %v268 = vld [vmem:[%s217 + $0x60] sm:$0xff]
        %v269 = vld [vmem:[%s217 + $0x68] sm:$0xff]
        %v270 = vld [vmem:[%s217 + $0x70] sm:$0xff]
        %v271 = vld [vmem:[%s217 + $0x78] sm:$0xff]
        %v272 = vld [vmem:[#allocation5] sm:$0xff]
        %v273 = vld [vmem:[#allocation5 + $0x8] sm:$0xff]
        %v274 = vld [vmem:[#allocation5 + $0x10] sm:$0xff]
        %v275 = vld [vmem:[#allocation5 + $0x18] sm:$0xff]
        %v276 = vld [vmem:[#allocation5 + $0x20] sm:$0xff]
        %v277 = vld [vmem:[#allocation5 + $0x28] sm:$0xff]
        %v278 = vld [vmem:[#allocation5 + $0x30] sm:$0xff]
        %v279 = vld [vmem:[#allocation5 + $0x38] sm:$0xff]
        %v280 = vld [vmem:[#allocation5 + $0x40] sm:$0xff]
        %v281 = vld [vmem:[#allocation5 + $0x48] sm:$0xff]
        %v282 = vld [vmem:[#allocation5 + $0x50] sm:$0xff]
        %v283 = vld [vmem:[#allocation5 + $0x58] sm:$0xff]
        %v284 = vld [vmem:[#allocation5 + $0x60] sm:$0xff]
        %v285 = vld [vmem:[#allocation5 + $0x68] sm:$0xff]
        %v286 = vld [vmem:[#allocation5 + $0x70] sm:$0xff]
        %v287 = vld [vmem:[#allocation5 + $0x78] sm:$0xff]
        %v288 = vld [vmem:[#allocation5 + $0x80] sm:$0xff]
        %v289 = vld [vmem:[#allocation5 + $0x88] sm:$0xff]
        %v290 = vld [vmem:[#allocation5 + $0x90] sm:$0xff]
        %v291 = vld [vmem:[#allocation5 + $0x98] sm:$0xff]
        %v292 = vld [vmem:[#allocation5 + $0xa0] sm:$0xff]
        %v293 = vld [vmem:[#allocation5 + $0xa8] sm:$0xff]
        %v294 = vld [vmem:[#allocation5 + $0xb0] sm:$0xff]
        %v295 = vld [vmem:[#allocation5 + $0xb8] sm:$0xff]
        %v296 = vld [vmem:[#allocation5 + $0xc0] sm:$0xff]
        %v297 = vld [vmem:[#allocation5 + $0xc8] sm:$0xff]
        %v298 = vld [vmem:[#allocation5 + $0xd0] sm:$0xff]
        %v299 = vld [vmem:[#allocation5 + $0xd8] sm:$0xff]
        %v300 = vld [vmem:[#allocation5 + $0xe0] sm:$0xff]
        %v301 = vld [vmem:[#allocation5 + $0xe8] sm:$0xff]
        %v302 = vld [vmem:[#allocation5 + $0xf0] sm:$0xff]
        %v303 = vld [vmem:[#allocation5 + $0xf8] sm:$0xff]
        %v304 = vld [vmem:[#allocation5 + $0x100] sm:$0xff]
        %v305 = vld [vmem:[#allocation5 + $0x108] sm:$0xff]
        %v306 = vld [vmem:[#allocation5 + $0x110] sm:$0xff]
        %v307 = vld [vmem:[#allocation5 + $0x118] sm:$0xff]
        %v308 = vld [vmem:[#allocation5 + $0x120] sm:$0xff]
        %v309 = vld [vmem:[#allocation5 + $0x128] sm:$0xff]
        %v310 = vld [vmem:[#allocation5 + $0x130] sm:$0xff]
        %v311 = vld [vmem:[#allocation5 + $0x138] sm:$0xff]
        %v312 = vld [vmem:[#allocation5 + $0x140] sm:$0xff]
        %v313 = vld [vmem:[#allocation5 + $0x148] sm:$0xff]
        %v314 = vld [vmem:[#allocation5 + $0x150] sm:$0xff]
        %v315 = vld [vmem:[#allocation5 + $0x158] sm:$0xff]
        %v316 = vld [vmem:[#allocation5 + $0x160] sm:$0xff]
        %v317 = vld [vmem:[#allocation5 + $0x168] sm:$0xff]
        %v318 = vld [vmem:[#allocation5 + $0x170] sm:$0xff]
        %v319 = vld [vmem:[#allocation5 + $0x178] sm:$0xff]
        %v320 = vld [vmem:[#allocation5 + $0x180] sm:$0xff]
        %v321 = vld [vmem:[#allocation5 + $0x188] sm:$0xff]
        %v322 = vld [vmem:[#allocation5 + $0x190] sm:$0xff]
        %v323 = vld [vmem:[#allocation5 + $0x198] sm:$0xff]
        %v324 = vld [vmem:[#allocation5 + $0x1a0] sm:$0xff]
        %v325 = vld [vmem:[#allocation5 + $0x1a8] sm:$0xff]
        %v326 = vld [vmem:[#allocation5 + $0x1b0] sm:$0xff]
        %v327 = vld [vmem:[#allocation5 + $0x1b8] sm:$0xff]
        %v328 = vld [vmem:[#allocation5 + $0x1c0] sm:$0xff]
        %v329 = vld [vmem:[#allocation5 + $0x1c8] sm:$0xff]
        %v330 = vld [vmem:[#allocation5 + $0x1d0] sm:$0xff]
        %v331 = vld [vmem:[#allocation5 + $0x1d8] sm:$0xff]
        %v332 = vld [vmem:[#allocation5 + $0x1e0] sm:$0xff]
        %v333 = vld [vmem:[#allocation5 + $0x1e8] sm:$0xff]
        %v334 = vld [vmem:[#allocation5 + $0x1f0] sm:$0xff]
        %v335 = vld [vmem:[#allocation5 + $0x1f8] sm:$0xff]
        %v336 = vld [vmem:[#allocation7] sm:$0xf]
        %v338 = vperm.slane %v336, 0
        %v339 = vperm.slane %v336, 1
        %v340 = vperm.slane %v336, 2
        %v341 = vperm.slane %v336, 3
        %346 = vmatpush.xpose.msra.mxu0 %v287
        %347 = vmatpush.xpose.msra.mxu0 %v286
        %348 = vmatpush.xpose.msra.mxu0 %v285
        %349 = vmatpush.xpose.msra.mxu0 %v284
        %350 = vmatpush.xpose.msra.mxu0 %v283
        %351 = vmatpush.xpose.msra.mxu0 %v282
        %352 = vmatpush.xpose.msra.mxu0 %v281
        %353 = vmatpush.xpose.msra.mxu0 %v280
        %354 = vmatpush.xpose.msra.mxu0 %v279
        %355 = vmatpush.xpose.msra.mxu0 %v278
        %356 = vmatpush.xpose.msra.mxu0 %v277
        %357 = vmatpush.xpose.msra.mxu0 %v276
        %358 = vmatpush.xpose.msra.mxu0 %v275
        %359 = vmatpush.xpose.msra.mxu0 %v274
        %360 = vmatpush.xpose.msra.mxu0 %v273
        %361 = vmatpush.xpose.msra.mxu0 %v272
        %362 = vmatmul.f32.gmra.mxu0 %v256
        %v363 = vpop.f32.mrf.mxu0
        %v364 = vadd.f32 %v338, %v363
        %365 = vmatmul.f32.gmra.mxu0 %v257
        %v366 = vpop.f32.mrf.mxu0
        %v367 = vadd.f32 %v338, %v366
        %368 = vmatmul.f32.gmra.mxu0 %v258
        %v369 = vpop.f32.mrf.mxu0
        %v370 = vadd.f32 %v338, %v369
        %371 = vmatmul.f32.gmra.mxu0 %v259
        %v372 = vpop.f32.mrf.mxu0
        %v373 = vadd.f32 %v338, %v372
        %374 = vmatmul.f32.gmra.mxu0 %v260
        %v375 = vpop.f32.mrf.mxu0
        %v376 = vadd.f32 %v338, %v375
        %377 = vmatmul.f32.gmra.mxu0 %v261
        %v378 = vpop.f32.mrf.mxu0
        %v379 = vadd.f32 %v338, %v378
        %380 = vmatmul.f32.gmra.mxu0 %v262
        %v381 = vpop.f32.mrf.mxu0
        %v382 = vadd.f32 %v338, %v381
        %383 = vmatmul.f32.gmra.mxu0 %v263
        %v384 = vpop.f32.mrf.mxu0
        %v385 = vadd.f32 %v338, %v384
        %386 = vmatmul.f32.gmra.mxu0 %v264
        %v387 = vpop.f32.mrf.mxu0
        %v388 = vadd.f32 %v338, %v387
        %389 = vmatmul.f32.gmra.mxu0 %v265
        %v390 = vpop.f32.mrf.mxu0
        %v391 = vadd.f32 %v338, %v390
        %392 = vmatmul.f32.gmra.mxu0 %v266
        %v393 = vpop.f32.mrf.mxu0
        %v394 = vadd.f32 %v338, %v393
        %395 = vmatmul.f32.gmra.mxu0 %v267
        %v396 = vpop.f32.mrf.mxu0
        %v397 = vadd.f32 %v338, %v396
        %398 = vmatmul.f32.gmra.mxu0 %v268
        %v399 = vpop.f32.mrf.mxu0
        %v400 = vadd.f32 %v338, %v399
        %401 = vmatmul.f32.gmra.mxu0 %v269
        %v402 = vpop.f32.mrf.mxu0
        %v403 = vadd.f32 %v338, %v402
        %404 = vmatmul.f32.gmra.mxu0 %v270
        %v405 = vpop.f32.mrf.mxu0
        %v406 = vadd.f32 %v338, %v405
        %407 = vmatmul.f32.gmra.mxu0 %v271
        %v408 = vpop.f32.mrf.mxu0
        %v409 = vadd.f32 %v338, %v408
        %410 = vdwg.mxu0
        %411 = vmatpush.xpose.msra.mxu0 %v303
        %412 = vmatpush.xpose.msra.mxu0 %v302
        %413 = vmatpush.xpose.msra.mxu0 %v301
        %414 = vmatpush.xpose.msra.mxu0 %v300
        %415 = vmatpush.xpose.msra.mxu0 %v299
        %416 = vmatpush.xpose.msra.mxu0 %v298
        %417 = vmatpush.xpose.msra.mxu0 %v297
        %418 = vmatpush.xpose.msra.mxu0 %v296
        %419 = vmatpush.xpose.msra.mxu0 %v295
        %420 = vmatpush.xpose.msra.mxu0 %v294
        %421 = vmatpush.xpose.msra.mxu0 %v293
        %422 = vmatpush.xpose.msra.mxu0 %v292
        %423 = vmatpush.xpose.msra.mxu0 %v291
        %424 = vmatpush.xpose.msra.mxu0 %v290
        %425 = vmatpush.xpose.msra.mxu0 %v289
        %426 = vmatpush.xpose.msra.mxu0 %v288
        %427 = vmatmul.f32.gmra.mxu0 %v256
        %v428 = vpop.f32.mrf.mxu0
        %v429 = vadd.f32 %v339, %v428
        %430 = vmatmul.f32.gmra.mxu0 %v257
        %v431 = vpop.f32.mrf.mxu0
        %v432 = vadd.f32 %v339, %v431
        %433 = vmatmul.f32.gmra.mxu0 %v258
        %v434 = vpop.f32.mrf.mxu0
        %v435 = vadd.f32 %v339, %v434
        %436 = vmatmul.f32.gmra.mxu0 %v259
        %v437 = vpop.f32.mrf.mxu0
        %v438 = vadd.f32 %v339, %v437
        %439 = vmatmul.f32.gmra.mxu0 %v260
        %v440 = vpop.f32.mrf.mxu0
        %v441 = vadd.f32 %v339, %v440
        %442 = vmatmul.f32.gmra.mxu0 %v261
        %v443 = vpop.f32.mrf.mxu0
        %v444 = vadd.f32 %v339, %v443
        %445 = vmatmul.f32.gmra.mxu0 %v262
        %v446 = vpop.f32.mrf.mxu0
        %v447 = vadd.f32 %v339, %v446
        %448 = vmatmul.f32.gmra.mxu0 %v263
        %v449 = vpop.f32.mrf.mxu0
        %v450 = vadd.f32 %v339, %v449
        %451 = vmatmul.f32.gmra.mxu0 %v264
        %v452 = vpop.f32.mrf.mxu0
        %v453 = vadd.f32 %v339, %v452
        %454 = vmatmul.f32.gmra.mxu0 %v265
        %v455 = vpop.f32.mrf.mxu0
        %v456 = vadd.f32 %v339, %v455
        %457 = vmatmul.f32.gmra.mxu0 %v266
        %v458 = vpop.f32.mrf.mxu0
        %v459 = vadd.f32 %v339, %v458
        %460 = vmatmul.f32.gmra.mxu0 %v267
        %v461 = vpop.f32.mrf.mxu0
        %v462 = vadd.f32 %v339, %v461
        %463 = vmatmul.f32.gmra.mxu0 %v268
        %v464 = vpop.f32.mrf.mxu0
        %v465 = vadd.f32 %v339, %v464
        %466 = vmatmul.f32.gmra.mxu0 %v269
        %v467 = vpop.f32.mrf.mxu0
        %v468 = vadd.f32 %v339, %v467
        %469 = vmatmul.f32.gmra.mxu0 %v270
        %v470 = vpop.f32.mrf.mxu0
        %v471 = vadd.f32 %v339, %v470
        %472 = vmatmul.f32.gmra.mxu0 %v271
        %v473 = vpop.f32.mrf.mxu0
        %v474 = vadd.f32 %v339, %v473
        %475 = vdwg.mxu0
        %476 = vmatpush.xpose.msra.mxu0 %v319
        %477 = vmatpush.xpose.msra.mxu0 %v318
        %478 = vmatpush.xpose.msra.mxu0 %v317
        %479 = vmatpush.xpose.msra.mxu0 %v316
        %480 = vmatpush.xpose.msra.mxu0 %v315
        %481 = vmatpush.xpose.msra.mxu0 %v314
        %482 = vmatpush.xpose.msra.mxu0 %v313
        %483 = vmatpush.xpose.msra.mxu0 %v312
        %484 = vmatpush.xpose.msra.mxu0 %v311
        %485 = vmatpush.xpose.msra.mxu0 %v310
        %486 = vmatpush.xpose.msra.mxu0 %v309
        %487 = vmatpush.xpose.msra.mxu0 %v308
        %488 = vmatpush.xpose.msra.mxu0 %v307
        %489 = vmatpush.xpose.msra.mxu0 %v306
        %490 = vmatpush.xpose.msra.mxu0 %v305
        %491 = vmatpush.xpose.msra.mxu0 %v304
        %492 = vmatmul.f32.gmra.mxu0 %v256
        %v493 = vpop.f32.mrf.mxu0
        %v494 = vadd.f32 %v340, %v493
        %495 = vmatmul.f32.gmra.mxu0 %v257
        %v496 = vpop.f32.mrf.mxu0
        %v497 = vadd.f32 %v340, %v496
        %498 = vmatmul.f32.gmra.mxu0 %v258
        %v499 = vpop.f32.mrf.mxu0
        %v500 = vadd.f32 %v340, %v499
        %501 = vmatmul.f32.gmra.mxu0 %v259
        %v502 = vpop.f32.mrf.mxu0
        %v503 = vadd.f32 %v340, %v502
        %504 = vmatmul.f32.gmra.mxu0 %v260
        %v505 = vpop.f32.mrf.mxu0
        %v506 = vadd.f32 %v340, %v505
        %507 = vmatmul.f32.gmra.mxu0 %v261
        %v508 = vpop.f32.mrf.mxu0
        %v509 = vadd.f32 %v340, %v508
        %510 = vmatmul.f32.gmra.mxu0 %v262
        %v511 = vpop.f32.mrf.mxu0
        %v512 = vadd.f32 %v340, %v511
        %513 = vmatmul.f32.gmra.mxu0 %v263
        %v514 = vpop.f32.mrf.mxu0
        %v515 = vadd.f32 %v340, %v514
        %516 = vmatmul.f32.gmra.mxu0 %v264
        %v517 = vpop.f32.mrf.mxu0
        %v518 = vadd.f32 %v340, %v517
        %519 = vmatmul.f32.gmra.mxu0 %v265
        %v520 = vpop.f32.mrf.mxu0
        %v521 = vadd.f32 %v340, %v520
        %522 = vmatmul.f32.gmra.mxu0 %v266
        %v523 = vpop.f32.mrf.mxu0
        %v524 = vadd.f32 %v340, %v523
        %525 = vmatmul.f32.gmra.mxu0 %v267
        %v526 = vpop.f32.mrf.mxu0
        %v527 = vadd.f32 %v340, %v526
        %528 = vmatmul.f32.gmra.mxu0 %v268
        %v529 = vpop.f32.mrf.mxu0
        %v530 = vadd.f32 %v340, %v529
        %531 = vmatmul.f32.gmra.mxu0 %v269
        %v532 = vpop.f32.mrf.mxu0
        %v533 = vadd.f32 %v340, %v532
        %534 = vmatmul.f32.gmra.mxu0 %v270
        %v535 = vpop.f32.mrf.mxu0
        %v536 = vadd.f32 %v340, %v535
        %537 = vmatmul.f32.gmra.mxu0 %v271
        %v538 = vpop.f32.mrf.mxu0
        %v539 = vadd.f32 %v340, %v538
        %540 = vdwg.mxu0
        %541 = vmatpush.xpose.msra.mxu0 %v335
        %542 = vmatpush.xpose.msra.mxu0 %v334
        %543 = vmatpush.xpose.msra.mxu0 %v333
        %544 = vmatpush.xpose.msra.mxu0 %v332
        %545 = vmatpush.xpose.msra.mxu0 %v331
        %546 = vmatpush.xpose.msra.mxu0 %v330
        %547 = vmatpush.xpose.msra.mxu0 %v329
        %548 = vmatpush.xpose.msra.mxu0 %v328
        %549 = vmatpush.xpose.msra.mxu0 %v327
        %550 = vmatpush.xpose.msra.mxu0 %v326
        %551 = vmatpush.xpose.msra.mxu0 %v325
        %552 = vmatpush.xpose.msra.mxu0 %v324
        %553 = vmatpush.xpose.msra.mxu0 %v323
        %554 = vmatpush.xpose.msra.mxu0 %v322
        %555 = vmatpush.xpose.msra.mxu0 %v321
        %556 = vmatpush.xpose.msra.mxu0 %v320
        %557 = vmatmul.f32.gmra.mxu0 %v256
        %v558 = vpop.f32.mrf.mxu0
        %v559 = vadd.f32 %v341, %v558
        %560 = vmatmul.f32.gmra.mxu0 %v257
        %v561 = vpop.f32.mrf.mxu0
        %v562 = vadd.f32 %v341, %v561
        %563 = vmatmul.f32.gmra.mxu0 %v258
        %v564 = vpop.f32.mrf.mxu0
        %v565 = vadd.f32 %v341, %v564
        %566 = vmatmul.f32.gmra.mxu0 %v259
        %v567 = vpop.f32.mrf.mxu0
        %v568 = vadd.f32 %v341, %v567
        %569 = vmatmul.f32.gmra.mxu0 %v260
        %v570 = vpop.f32.mrf.mxu0
        %v571 = vadd.f32 %v341, %v570
        %572 = vmatmul.f32.gmra.mxu0 %v261
        %v573 = vpop.f32.mrf.mxu0
        %v574 = vadd.f32 %v341, %v573
        %575 = vmatmul.f32.gmra.mxu0 %v262
        %v576 = vpop.f32.mrf.mxu0
        %v577 = vadd.f32 %v341, %v576
        %578 = vmatmul.f32.gmra.mxu0 %v263
        %v579 = vpop.f32.mrf.mxu0
        %v580 = vadd.f32 %v341, %v579
        %581 = vmatmul.f32.gmra.mxu0 %v264
        %v582 = vpop.f32.mrf.mxu0
        %v583 = vadd.f32 %v341, %v582
        %584 = vmatmul.f32.gmra.mxu0 %v265
        %v585 = vpop.f32.mrf.mxu0
        %v586 = vadd.f32 %v341, %v585
        %587 = vmatmul.f32.gmra.mxu0 %v266
        %v588 = vpop.f32.mrf.mxu0
        %v589 = vadd.f32 %v341, %v588
        %590 = vmatmul.f32.gmra.mxu0 %v267
        %v591 = vpop.f32.mrf.mxu0
        %v592 = vadd.f32 %v341, %v591
        %593 = vmatmul.f32.gmra.mxu0 %v268
        %v594 = vpop.f32.mrf.mxu0
        %v595 = vadd.f32 %v341, %v594
        %596 = vmatmul.f32.gmra.mxu0 %v269
        %v597 = vpop.f32.mrf.mxu0
        %v598 = vadd.f32 %v341, %v597
        %599 = vmatmul.f32.gmra.mxu0 %v270
        %v600 = vpop.f32.mrf.mxu0
        %v601 = vadd.f32 %v341, %v600
        %602 = vmatmul.f32.gmra.mxu0 %v271
        %v603 = vpop.f32.mrf.mxu0
        %v604 = vadd.f32 %v341, %v603
        %605 = vdwg.mxu0
        %v606 = vmul.f32 %v364, 0.5
        %v607 = vmul.f32 %v429, 0.5
        %v608 = vmul.f32 %v494, 0.5
        %v609 = vmul.f32 %v559, 0.5
        %v610 = vmul.f32 %v367, 0.5
        %v611 = vmul.f32 %v432, 0.5
        %v612 = vmul.f32 %v497, 0.5
        %v613 = vmul.f32 %v562, 0.5
        %v614 = vmul.f32 %v370, 0.5
        %v615 = vmul.f32 %v435, 0.5
        %v616 = vmul.f32 %v500, 0.5
        %v617 = vmul.f32 %v565, 0.5
        %v618 = vmul.f32 %v373, 0.5
        %v619 = vmul.f32 %v438, 0.5
        %v620 = vmul.f32 %v503, 0.5
        %v621 = vmul.f32 %v568, 0.5
        %v622 = vmul.f32 %v376, 0.5
        %v623 = vmul.f32 %v441, 0.5
        %v624 = vmul.f32 %v506, 0.5
        %v625 = vmul.f32 %v571, 0.5
        %v626 = vmul.f32 %v379, 0.5
        %v627 = vmul.f32 %v444, 0.5
        %v628 = vmul.f32 %v509, 0.5
        %v629 = vmul.f32 %v574, 0.5
        %v630 = vmul.f32 %v382, 0.5
        %v631 = vmul.f32 %v447, 0.5
        %v632 = vmul.f32 %v512, 0.5
        %v633 = vmul.f32 %v577, 0.5
        %v634 = vmul.f32 %v385, 0.5
        %v635 = vmul.f32 %v450, 0.5
        %v636 = vmul.f32 %v515, 0.5
        %v637 = vmul.f32 %v580, 0.5
        %v638 = vmul.f32 %v388, 0.5
        %v639 = vmul.f32 %v453, 0.5
        %v640 = vmul.f32 %v518, 0.5
        %v641 = vmul.f32 %v583, 0.5
        %v642 = vmul.f32 %v391, 0.5
        %v643 = vmul.f32 %v456, 0.5
        %v644 = vmul.f32 %v521, 0.5
        %v645 = vmul.f32 %v586, 0.5
        %v646 = vmul.f32 %v394, 0.5
        %v647 = vmul.f32 %v459, 0.5
        %v648 = vmul.f32 %v524, 0.5
        %v649 = vmul.f32 %v589, 0.5
        %v650 = vmul.f32 %v397, 0.5
        %v651 = vmul.f32 %v462, 0.5
        %v652 = vmul.f32 %v527, 0.5
        %v653 = vmul.f32 %v592, 0.5
        %v654 = vmul.f32 %v400, 0.5
        %v655 = vmul.f32 %v465, 0.5
        %v656 = vmul.f32 %v530, 0.5
        %v657 = vmul.f32 %v595, 0.5
        %v658 = vmul.f32 %v403, 0.5
        %v659 = vmul.f32 %v468, 0.5
        %v660 = vmul.f32 %v533, 0.5
        %v661 = vmul.f32 %v598, 0.5
        %v662 = vmul.f32 %v406, 0.5
        %v663 = vmul.f32 %v471, 0.5
        %v664 = vmul.f32 %v536, 0.5
        %v665 = vmul.f32 %v601, 0.5
        %v666 = vmul.f32 %v409, 0.5
        %v667 = vmul.f32 %v474, 0.5
        %v668 = vmul.f32 %v539, 0.5
        %v669 = vmul.f32 %v604, 0.5
        %v670 = vmul.f32 %v364, 0.044715
        %v671 = vmul.f32 %v429, 0.044715
        %v672 = vmul.f32 %v494, 0.044715
        %v673 = vmul.f32 %v559, 0.044715
        %v674 = vmul.f32 %v367, 0.044715
        %v675 = vmul.f32 %v432, 0.044715
        %v676 = vmul.f32 %v497, 0.044715
        %v677 = vmul.f32 %v562, 0.044715
        %v678 = vmul.f32 %v370, 0.044715
        %v679 = vmul.f32 %v435, 0.044715
        %v680 = vmul.f32 %v500, 0.044715
        %v681 = vmul.f32 %v565, 0.044715
        %v682 = vmul.f32 %v373, 0.044715
        %v683 = vmul.f32 %v438, 0.044715
        %v684 = vmul.f32 %v503, 0.044715
        %v685 = vmul.f32 %v568, 0.044715
        %v686 = vmul.f32 %v376, 0.044715
        %v687 = vmul.f32 %v441, 0.044715
        %v688 = vmul.f32 %v506, 0.044715
        %v689 = vmul.f32 %v571, 0.044715
        %v690 = vmul.f32 %v379, 0.044715
        %v691 = vmul.f32 %v444, 0.044715
        %v692 = vmul.f32 %v509, 0.044715
        %v693 = vmul.f32 %v574, 0.044715
        %v694 = vmul.f32 %v382, 0.044715
        %v695 = vmul.f32 %v447, 0.044715
        %v696 = vmul.f32 %v512, 0.044715
        %v697 = vmul.f32 %v577, 0.044715
        %v698 = vmul.f32 %v385, 0.044715
        %v699 = vmul.f32 %v450, 0.044715
        %v700 = vmul.f32 %v515, 0.044715
        %v701 = vmul.f32 %v580, 0.044715
        %v702 = vmul.f32 %v388, 0.044715
        %v703 = vmul.f32 %v453, 0.044715
        %v704 = vmul.f32 %v518, 0.044715
        %v705 = vmul.f32 %v583, 0.044715
        %v706 = vmul.f32 %v391, 0.044715
        %v707 = vmul.f32 %v456, 0.044715
        %v708 = vmul.f32 %v521, 0.044715
        %v709 = vmul.f32 %v586, 0.044715
        %v710 = vmul.f32 %v394, 0.044715
        %v711 = vmul.f32 %v459, 0.044715
        %v712 = vmul.f32 %v524, 0.044715
        %v713 = vmul.f32 %v589, 0.044715
        %v714 = vmul.f32 %v397, 0.044715
        %v715 = vmul.f32 %v462, 0.044715
        %v716 = vmul.f32 %v527, 0.044715
        %v717 = vmul.f32 %v592, 0.044715
        %v718 = vmul.f32 %v400, 0.044715
        %v719 = vmul.f32 %v465, 0.044715
        %v720 = vmul.f32 %v530, 0.044715
        %v721 = vmul.f32 %v595, 0.044715
        %v722 = vmul.f32 %v403, 0.044715
        %v723 = vmul.f32 %v468, 0.044715
        %v724 = vmul.f32 %v533, 0.044715
        %v725 = vmul.f32 %v598, 0.044715
        %v726 = vmul.f32 %v406, 0.044715
        %v727 = vmul.f32 %v471, 0.044715
        %v728 = vmul.f32 %v536, 0.044715
        %v729 = vmul.f32 %v601, 0.044715
        %v730 = vmul.f32 %v409, 0.044715
        %v731 = vmul.f32 %v474, 0.044715
        %v732 = vmul.f32 %v539, 0.044715
        %v733 = vmul.f32 %v604, 0.044715
        %v734 = vmul.f32 %v670, %v364
        %v735 = vmul.f32 %v671, %v429
        %v736 = vmul.f32 %v672, %v494
        %v737 = vmul.f32 %v673, %v559
        %v738 = vmul.f32 %v674, %v367
        %v739 = vmul.f32 %v675, %v432
        %v740 = vmul.f32 %v676, %v497
        %v741 = vmul.f32 %v677, %v562
        %v742 = vmul.f32 %v678, %v370
        %v743 = vmul.f32 %v679, %v435
        %v744 = vmul.f32 %v680, %v500
        %v745 = vmul.f32 %v681, %v565
        %v746 = vmul.f32 %v682, %v373
        %v747 = vmul.f32 %v683, %v438
        %v748 = vmul.f32 %v684, %v503
        %v749 = vmul.f32 %v685, %v568
        %v750 = vmul.f32 %v686, %v376
        %v751 = vmul.f32 %v687, %v441
        %v752 = vmul.f32 %v688, %v506
        %v753 = vmul.f32 %v689, %v571
        %v754 = vmul.f32 %v690, %v379
        %v755 = vmul.f32 %v691, %v444
        %v756 = vmul.f32 %v692, %v509
        %v757 = vmul.f32 %v693, %v574
        %v758 = vmul.f32 %v694, %v382
        %v759 = vmul.f32 %v695, %v447
        %v760 = vmul.f32 %v696, %v512
        %v761 = vmul.f32 %v697, %v577
        %v762 = vmul.f32 %v698, %v385
        %v763 = vmul.f32 %v699, %v450
        %v764 = vmul.f32 %v700, %v515
        %v765 = vmul.f32 %v701, %v580
        %v766 = vmul.f32 %v702, %v388
        %v767 = vmul.f32 %v703, %v453
        %v768 = vmul.f32 %v704, %v518
        %v769 = vmul.f32 %v705, %v583
        %v770 = vmul.f32 %v706, %v391
        %v771 = vmul.f32 %v707, %v456
        %v772 = vmul.f32 %v708, %v521
        %v773 = vmul.f32 %v709, %v586
        %v774 = vmul.f32 %v710, %v394
        %v775 = vmul.f32 %v711, %v459
        %v776 = vmul.f32 %v712, %v524
        %v777 = vmul.f32 %v713, %v589
        %v778 = vmul.f32 %v714, %v397
        %v779 = vmul.f32 %v715, %v462
        %v780 = vmul.f32 %v716, %v527
        %v781 = vmul.f32 %v717, %v592
        %v782 = vmul.f32 %v718, %v400
        %v783 = vmul.f32 %v719, %v465
        %v784 = vmul.f32 %v720, %v530
        %v785 = vmul.f32 %v721, %v595
        %v786 = vmul.f32 %v722, %v403
        %v787 = vmul.f32 %v723, %v468
        %v788 = vmul.f32 %v724, %v533
        %v789 = vmul.f32 %v725, %v598
        %v790 = vmul.f32 %v726, %v406
        %v791 = vmul.f32 %v727, %v471
        %v792 = vmul.f32 %v728, %v536
        %v793 = vmul.f32 %v729, %v601
        %v794 = vmul.f32 %v730, %v409
        %v795 = vmul.f32 %v731, %v474
        %v796 = vmul.f32 %v732, %v539
        %v797 = vmul.f32 %v733, %v604
        %v798 = vmul.f32 %v734, %v364
        %v799 = vmul.f32 %v735, %v429
        %v800 = vmul.f32 %v736, %v494
        %v801 = vmul.f32 %v737, %v559
        %v802 = vmul.f32 %v738, %v367
        %v803 = vmul.f32 %v739, %v432
        %v804 = vmul.f32 %v740, %v497
        %v805 = vmul.f32 %v741, %v562
        %v806 = vmul.f32 %v742, %v370
        %v807 = vmul.f32 %v743, %v435
        %v808 = vmul.f32 %v744, %v500
        %v809 = vmul.f32 %v745, %v565
        %v810 = vmul.f32 %v746, %v373
        %v811 = vmul.f32 %v747, %v438
        %v812 = vmul.f32 %v748, %v503
        %v813 = vmul.f32 %v749, %v568
        %v814 = vmul.f32 %v750, %v376
        %v815 = vmul.f32 %v751, %v441
        %v816 = vmul.f32 %v752, %v506
        %v817 = vmul.f32 %v753, %v571
        %v818 = vmul.f32 %v754, %v379
        %v819 = vmul.f32 %v755, %v444
        %v820 = vmul.f32 %v756, %v509
        %v821 = vmul.f32 %v757, %v574
        %v822 = vmul.f32 %v758, %v382
        %v823 = vmul.f32 %v759, %v447
        %v824 = vmul.f32 %v760, %v512
        %v825 = vmul.f32 %v761, %v577
        %v826 = vmul.f32 %v762, %v385
        %v827 = vmul.f32 %v763, %v450
        %v828 = vmul.f32 %v764, %v515
        %v829 = vmul.f32 %v765, %v580
        %v830 = vmul.f32 %v766, %v388
        %v831 = vmul.f32 %v767, %v453
        %v832 = vmul.f32 %v768, %v518
        %v833 = vmul.f32 %v769, %v583
        %v834 = vmul.f32 %v770, %v391
        %v835 = vmul.f32 %v771, %v456
        %v836 = vmul.f32 %v772, %v521
        %v837 = vmul.f32 %v773, %v586
        %v838 = vmul.f32 %v774, %v394
        %v839 = vmul.f32 %v775, %v459
        %v840 = vmul.f32 %v776, %v524
        %v841 = vmul.f32 %v777, %v589
        %v842 = vmul.f32 %v778, %v397
        %v843 = vmul.f32 %v779, %v462
        %v844 = vmul.f32 %v780, %v527
        %v845 = vmul.f32 %v781, %v592
        %v846 = vmul.f32 %v782, %v400
        %v847 = vmul.f32 %v783, %v465
        %v848 = vmul.f32 %v784, %v530
        %v849 = vmul.f32 %v785, %v595
        %v850 = vmul.f32 %v786, %v403
        %v851 = vmul.f32 %v787, %v468
        %v852 = vmul.f32 %v788, %v533
        %v853 = vmul.f32 %v789, %v598
        %v854 = vmul.f32 %v790, %v406
        %v855 = vmul.f32 %v791, %v471
        %v856 = vmul.f32 %v792, %v536
        %v857 = vmul.f32 %v793, %v601
        %v858 = vmul.f32 %v794, %v409
        %v859 = vmul.f32 %v795, %v474
        %v860 = vmul.f32 %v796, %v539
        %v861 = vmul.f32 %v797, %v604
        %v862 = vadd.f32 %v364, %v798
        %v863 = vadd.f32 %v429, %v799
        %v864 = vadd.f32 %v494, %v800
        %v865 = vadd.f32 %v559, %v801
        %v866 = vadd.f32 %v367, %v802
        %v867 = vadd.f32 %v432, %v803
        %v868 = vadd.f32 %v497, %v804
        %v869 = vadd.f32 %v562, %v805
        %v870 = vadd.f32 %v370, %v806
        %v871 = vadd.f32 %v435, %v807
        %v872 = vadd.f32 %v500, %v808
        %v873 = vadd.f32 %v565, %v809
        %v874 = vadd.f32 %v373, %v810
        %v875 = vadd.f32 %v438, %v811
        %v876 = vadd.f32 %v503, %v812
        %v877 = vadd.f32 %v568, %v813
        %v878 = vadd.f32 %v376, %v814
        %v879 = vadd.f32 %v441, %v815
        %v880 = vadd.f32 %v506, %v816
        %v881 = vadd.f32 %v571, %v817
        %v882 = vadd.f32 %v379, %v818
        %v883 = vadd.f32 %v444, %v819
        %v884 = vadd.f32 %v509, %v820
        %v885 = vadd.f32 %v574, %v821
        %v886 = vadd.f32 %v382, %v822
        %v887 = vadd.f32 %v447, %v823
        %v888 = vadd.f32 %v512, %v824
        %v889 = vadd.f32 %v577, %v825
        %v890 = vadd.f32 %v385, %v826
        %v891 = vadd.f32 %v450, %v827
        %v892 = vadd.f32 %v515, %v828
        %v893 = vadd.f32 %v580, %v829
        %v894 = vadd.f32 %v388, %v830
        %v895 = vadd.f32 %v453, %v831
        %v896 = vadd.f32 %v518, %v832
        %v897 = vadd.f32 %v583, %v833
        %v898 = vadd.f32 %v391, %v834
        %v899 = vadd.f32 %v456, %v835
        %v900 = vadd.f32 %v521, %v836
        %v901 = vadd.f32 %v586, %v837
        %v902 = vadd.f32 %v394, %v838
        %v903 = vadd.f32 %v459, %v839
        %v904 = vadd.f32 %v524, %v840
        %v905 = vadd.f32 %v589, %v841
        %v906 = vadd.f32 %v397, %v842
        %v907 = vadd.f32 %v462, %v843
        %v908 = vadd.f32 %v527, %v844
        %v909 = vadd.f32 %v592, %v845
        %v910 = vadd.f32 %v400, %v846
        %v911 = vadd.f32 %v465, %v847
        %v912 = vadd.f32 %v530, %v848
        %v913 = vadd.f32 %v595, %v849
        %v914 = vadd.f32 %v403, %v850
        %v915 = vadd.f32 %v468, %v851
        %v916 = vadd.f32 %v533, %v852
        %v917 = vadd.f32 %v598, %v853
        %v918 = vadd.f32 %v406, %v854
        %v919 = vadd.f32 %v471, %v855
        %v920 = vadd.f32 %v536, %v856
        %v921 = vadd.f32 %v601, %v857
        %v922 = vadd.f32 %v409, %v858
        %v923 = vadd.f32 %v474, %v859
        %v924 = vadd.f32 %v539, %v860
        %v925 = vadd.f32 %v604, %v861
        %v926 = vmul.f32 %v862, 0.7978846
        %v927 = vmul.f32 %v863, 0.7978846
        %v928 = vmul.f32 %v864, 0.7978846
        %v929 = vmul.f32 %v865, 0.7978846
        %v930 = vmul.f32 %v866, 0.7978846
        %v931 = vmul.f32 %v867, 0.7978846
        %v932 = vmul.f32 %v868, 0.7978846
        %v933 = vmul.f32 %v869, 0.7978846
        %v934 = vmul.f32 %v870, 0.7978846
        %v935 = vmul.f32 %v871, 0.7978846
        %v936 = vmul.f32 %v872, 0.7978846
        %v937 = vmul.f32 %v873, 0.7978846
        %v938 = vmul.f32 %v874, 0.7978846
        %v939 = vmul.f32 %v875, 0.7978846
        %v940 = vmul.f32 %v876, 0.7978846
        %v941 = vmul.f32 %v877, 0.7978846
        %v942 = vmul.f32 %v878, 0.7978846
        %v943 = vmul.f32 %v879, 0.7978846
        %v944 = vmul.f32 %v880, 0.7978846
        %v945 = vmul.f32 %v881, 0.7978846
        %v946 = vmul.f32 %v882, 0.7978846
        %v947 = vmul.f32 %v883, 0.7978846
        %v948 = vmul.f32 %v884, 0.7978846
        %v949 = vmul.f32 %v885, 0.7978846
        %v950 = vmul.f32 %v886, 0.7978846
        %v951 = vmul.f32 %v887, 0.7978846
        %v952 = vmul.f32 %v888, 0.7978846
        %v953 = vmul.f32 %v889, 0.7978846
        %v954 = vmul.f32 %v890, 0.7978846
        %v955 = vmul.f32 %v891, 0.7978846
        %v956 = vmul.f32 %v892, 0.7978846
        %v957 = vmul.f32 %v893, 0.7978846
        %v958 = vmul.f32 %v894, 0.7978846
        %v959 = vmul.f32 %v895, 0.7978846
        %v960 = vmul.f32 %v896, 0.7978846
        %v961 = vmul.f32 %v897, 0.7978846
        %v962 = vmul.f32 %v898, 0.7978846
        %v963 = vmul.f32 %v899, 0.7978846
        %v964 = vmul.f32 %v900, 0.7978846
        %v965 = vmul.f32 %v901, 0.7978846
        %v966 = vmul.f32 %v902, 0.7978846
        %v967 = vmul.f32 %v903, 0.7978846
        %v968 = vmul.f32 %v904, 0.7978846
        %v969 = vmul.f32 %v905, 0.7978846
        %v970 = vmul.f32 %v906, 0.7978846
        %v971 = vmul.f32 %v907, 0.7978846
        %v972 = vmul.f32 %v908, 0.7978846
        %v973 = vmul.f32 %v909, 0.7978846
        %v974 = vmul.f32 %v910, 0.7978846
        %v975 = vmul.f32 %v911, 0.7978846
        %v976 = vmul.f32 %v912, 0.7978846
        %v977 = vmul.f32 %v913, 0.7978846
        %v978 = vmul.f32 %v914, 0.7978846
        %v979 = vmul.f32 %v915, 0.7978846
        %v980 = vmul.f32 %v916, 0.7978846
        %v981 = vmul.f32 %v917, 0.7978846
        %v982 = vmul.f32 %v918, 0.7978846
        %v983 = vmul.f32 %v919, 0.7978846
        %v984 = vmul.f32 %v920, 0.7978846
        %v985 = vmul.f32 %v921, 0.7978846
        %v986 = vmul.f32 %v922, 0.7978846
        %v987 = vmul.f32 %v923, 0.7978846
        %v988 = vmul.f32 %v924, 0.7978846
        %v989 = vmul.f32 %v925, 0.7978846
        %v990 = vtanh.pop %v926
        %v991 = vtanh.pop %v927
        %v992 = vtanh.pop %v928
        %v993 = vtanh.pop %v929
        %v994 = vtanh.pop %v930
        %v995 = vtanh.pop %v931
        %v996 = vtanh.pop %v932
        %v997 = vtanh.pop %v933
        %v998 = vtanh.pop %v934
        %v999 = vtanh.pop %v935
        %v1000 = vtanh.pop %v936
        %v1001 = vtanh.pop %v937
        %v1002 = vtanh.pop %v938
        %v1003 = vtanh.pop %v939
        %v1004 = vtanh.pop %v940
        %v1005 = vtanh.pop %v941
        %v1006 = vtanh.pop %v942
        %v1007 = vtanh.pop %v943
        %v1008 = vtanh.pop %v944
        %v1009 = vtanh.pop %v945
        %v1010 = vtanh.pop %v946
        %v1011 = vtanh.pop %v947
        %v1012 = vtanh.pop %v948
        %v1013 = vtanh.pop %v949
        %v1014 = vtanh.pop %v950
        %v1015 = vtanh.pop %v951
        %v1016 = vtanh.pop %v952
        %v1017 = vtanh.pop %v953
        %v1018 = vtanh.pop %v954
        %v1019 = vtanh.pop %v955
        %v1020 = vtanh.pop %v956
        %v1021 = vtanh.pop %v957
        %v1022 = vtanh.pop %v958
        %v1023 = vtanh.pop %v959
        %v1024 = vtanh.pop %v960
        %v1025 = vtanh.pop %v961
        %v1026 = vtanh.pop %v962
        %v1027 = vtanh.pop %v963
        %v1028 = vtanh.pop %v964
        %v1029 = vtanh.pop %v965
        %v1030 = vtanh.pop %v966
        %v1031 = vtanh.pop %v967
        %v1032 = vtanh.pop %v968
        %v1033 = vtanh.pop %v969
        %v1034 = vtanh.pop %v970
        %v1035 = vtanh.pop %v971
        %v1036 = vtanh.pop %v972
        %v1037 = vtanh.pop %v973
        %v1038 = vtanh.pop %v974
        %v1039 = vtanh.pop %v975
        %v1040 = vtanh.pop %v976
        %v1041 = vtanh.pop %v977
        %v1042 = vtanh.pop %v978
        %v1043 = vtanh.pop %v979
        %v1044 = vtanh.pop %v980
        %v1045 = vtanh.pop %v981
        %v1046 = vtanh.pop %v982
        %v1047 = vtanh.pop %v983
        %v1048 = vtanh.pop %v984
        %v1049 = vtanh.pop %v985
        %v1050 = vtanh.pop %v986
        %v1051 = vtanh.pop %v987
        %v1052 = vtanh.pop %v988
        %v1053 = vtanh.pop %v989
        %v1054 = vadd.f32 %v990, 1.0
        %v1055 = vadd.f32 %v991, 1.0
        %v1056 = vadd.f32 %v992, 1.0
        %v1057 = vadd.f32 %v993, 1.0
        %v1058 = vadd.f32 %v994, 1.0
        %v1059 = vadd.f32 %v995, 1.0
        %v1060 = vadd.f32 %v996, 1.0
        %v1061 = vadd.f32 %v997, 1.0
        %v1062 = vadd.f32 %v998, 1.0
        %v1063 = vadd.f32 %v999, 1.0
        %v1064 = vadd.f32 %v1000, 1.0
        %v1065 = vadd.f32 %v1001, 1.0
        %v1066 = vadd.f32 %v1002, 1.0
        %v1067 = vadd.f32 %v1003, 1.0
        %v1068 = vadd.f32 %v1004, 1.0
        %v1069 = vadd.f32 %v1005, 1.0
        %v1070 = vadd.f32 %v1006, 1.0
        %v1071 = vadd.f32 %v1007, 1.0
        %v1072 = vadd.f32 %v1008, 1.0
        %v1073 = vadd.f32 %v1009, 1.0
        %v1074 = vadd.f32 %v1010, 1.0
        %v1075 = vadd.f32 %v1011, 1.0
        %v1076 = vadd.f32 %v1012, 1.0
        %v1077 = vadd.f32 %v1013, 1.0
        %v1078 = vadd.f32 %v1014, 1.0
        %v1079 = vadd.f32 %v1015, 1.0
        %v1080 = vadd.f32 %v1016, 1.0
        %v1081 = vadd.f32 %v1017, 1.0
        %v1082 = vadd.f32 %v1018, 1.0
        %v1083 = vadd.f32 %v1019, 1.0
        %v1084 = vadd.f32 %v1020, 1.0
        %v1085 = vadd.f32 %v1021, 1.0
        %v1086 = vadd.f32 %v1022, 1.0
        %v1087 = vadd.f32 %v1023, 1.0
        %v1088 = vadd.f32 %v1024, 1.0
        %v1089 = vadd.f32 %v1025, 1.0
        %v1090 = vadd.f32 %v1026, 1.0
        %v1091 = vadd.f32 %v1027, 1.0
        %v1092 = vadd.f32 %v1028, 1.0
        %v1093 = vadd.f32 %v1029, 1.0
        %v1094 = vadd.f32 %v1030, 1.0
        %v1095 = vadd.f32 %v1031, 1.0
        %v1096 = vadd.f32 %v1032, 1.0
        %v1097 = vadd.f32 %v1033, 1.0
        %v1098 = vadd.f32 %v1034, 1.0
        %v1099 = vadd.f32 %v1035, 1.0
        %v1100 = vadd.f32 %v1036, 1.0
        %v1101 = vadd.f32 %v1037, 1.0
        %v1102 = vadd.f32 %v1038, 1.0
        %v1103 = vadd.f32 %v1039, 1.0
        %v1104 = vadd.f32 %v1040, 1.0
        %v1105 = vadd.f32 %v1041, 1.0
        %v1106 = vadd.f32 %v1042, 1.0
        %v1107 = vadd.f32 %v1043, 1.0
        %v1108 = vadd.f32 %v1044, 1.0
        %v1109 = vadd.f32 %v1045, 1.0
        %v1110 = vadd.f32 %v1046, 1.0
        %v1111 = vadd.f32 %v1047, 1.0
        %v1112 = vadd.f32 %v1048, 1.0
        %v1113 = vadd.f32 %v1049, 1.0
        %v1114 = vadd.f32 %v1050, 1.0
        %v1115 = vadd.f32 %v1051, 1.0
        %v1116 = vadd.f32 %v1052, 1.0
        %v1117 = vadd.f32 %v1053, 1.0
        %v1118 = vmul.f32 %v606, %v1054
        %v1119 = vmul.f32 %v607, %v1055
        %v1120 = vmul.f32 %v608, %v1056
        %v1121 = vmul.f32 %v609, %v1057
        %v1122 = vmul.f32 %v610, %v1058
        %v1123 = vmul.f32 %v611, %v1059
        %v1124 = vmul.f32 %v612, %v1060
        %v1125 = vmul.f32 %v613, %v1061
        %v1126 = vmul.f32 %v614, %v1062
        %v1127 = vmul.f32 %v615, %v1063
        %v1128 = vmul.f32 %v616, %v1064
        %v1129 = vmul.f32 %v617, %v1065
        %v1130 = vmul.f32 %v618, %v1066
        %v1131 = vmul.f32 %v619, %v1067
        %v1132 = vmul.f32 %v620, %v1068
        %v1133 = vmul.f32 %v621, %v1069
        %v1134 = vmul.f32 %v622, %v1070
        %v1135 = vmul.f32 %v623, %v1071
        %v1136 = vmul.f32 %v624, %v1072
        %v1137 = vmul.f32 %v625, %v1073
        %v1138 = vmul.f32 %v626, %v1074
        %v1139 = vmul.f32 %v627, %v1075
        %v1140 = vmul.f32 %v628, %v1076
        %v1141 = vmul.f32 %v629, %v1077
        %v1142 = vmul.f32 %v630, %v1078
        %v1143 = vmul.f32 %v631, %v1079
        %v1144 = vmul.f32 %v632, %v1080
        %v1145 = vmul.f32 %v633, %v1081
        %v1146 = vmul.f32 %v634, %v1082
        %v1147 = vmul.f32 %v635, %v1083
        %v1148 = vmul.f32 %v636, %v1084
        %v1149 = vmul.f32 %v637, %v1085
        %v1150 = vmul.f32 %v638, %v1086
        %v1151 = vmul.f32 %v639, %v1087
        %v1152 = vmul.f32 %v640, %v1088
        %v1153 = vmul.f32 %v641, %v1089
        %v1154 = vmul.f32 %v642, %v1090
        %v1155 = vmul.f32 %v643, %v1091
        %v1156 = vmul.f32 %v644, %v1092
        %v1157 = vmul.f32 %v645, %v1093
        %v1158 = vmul.f32 %v646, %v1094
        %v1159 = vmul.f32 %v647, %v1095
        %v1160 = vmul.f32 %v648, %v1096
        %v1161 = vmul.f32 %v649, %v1097
        %v1162 = vmul.f32 %v650, %v1098
        %v1163 = vmul.f32 %v651, %v1099
        %v1164 = vmul.f32 %v652, %v1100
        %v1165 = vmul.f32 %v653, %v1101
        %v1166 = vmul.f32 %v654, %v1102
        %v1167 = vmul.f32 %v655, %v1103
        %v1168 = vmul.f32 %v656, %v1104
        %v1169 = vmul.f32 %v657, %v1105
        %v1170 = vmul.f32 %v658, %v1106
        %v1171 = vmul.f32 %v659, %v1107
        %v1172 = vmul.f32 %v660, %v1108
        %v1173 = vmul.f32 %v661, %v1109
        %v1174 = vmul.f32 %v662, %v1110
        %v1175 = vmul.f32 %v663, %v1111
        %v1176 = vmul.f32 %v664, %v1112
        %v1177 = vmul.f32 %v665, %v1113
        %v1178 = vmul.f32 %v666, %v1114
        %v1179 = vmul.f32 %v667, %v1115
        %v1180 = vmul.f32 %v668, %v1116
        %v1181 = vmul.f32 %v669, %v1117
        %1182 = vst [vmem:[%s250] sm:$0xff] %v1118
        %1183 = vst [vmem:[%s250 + $0x8] sm:$0xff] %v1119
        %1184 = vst [vmem:[%s250 + $0x10] sm:$0xff] %v1120
        %1185 = vst [vmem:[%s250 + $0x18] sm:$0xff] %v1121
        %1186 = vst [vmem:[%s250 + $0x20] sm:$0xff] %v1122
        %1187 = vst [vmem:[%s250 + $0x28] sm:$0xff] %v1123
        %1188 = vst [vmem:[%s250 + $0x30] sm:$0xff] %v1124
        %1189 = vst [vmem:[%s250 + $0x38] sm:$0xff] %v1125
        %1190 = vst [vmem:[%s250 + $0x40] sm:$0xff] %v1126
        %1191 = vst [vmem:[%s250 + $0x48] sm:$0xff] %v1127
        %1192 = vst [vmem:[%s250 + $0x50] sm:$0xff] %v1128
        %1193 = vst [vmem:[%s250 + $0x58] sm:$0xff] %v1129
        %1194 = vst [vmem:[%s250 + $0x60] sm:$0xff] %v1130
        %1195 = vst [vmem:[%s250 + $0x68] sm:$0xff] %v1131
        %1196 = vst [vmem:[%s250 + $0x70] sm:$0xff] %v1132
        %1197 = vst [vmem:[%s250 + $0x78] sm:$0xff] %v1133
        %1198 = vst [vmem:[%s250 + $0x80] sm:$0xff] %v1134
        %1199 = vst [vmem:[%s250 + $0x88] sm:$0xff] %v1135
        %1200 = vst [vmem:[%s250 + $0x90] sm:$0xff] %v1136
        %1201 = vst [vmem:[%s250 + $0x98] sm:$0xff] %v1137
        %1202 = vst [vmem:[%s250 + $0xa0] sm:$0xff] %v1138
        %1203 = vst [vmem:[%s250 + $0xa8] sm:$0xff] %v1139
        %1204 = vst [vmem:[%s250 + $0xb0] sm:$0xff] %v1140
        %1205 = vst [vmem:[%s250 + $0xb8] sm:$0xff] %v1141
        %1206 = vst [vmem:[%s250 + $0xc0] sm:$0xff] %v1142
        %1207 = vst [vmem:[%s250 + $0xc8] sm:$0xff] %v1143
        %1208 = vst [vmem:[%s250 + $0xd0] sm:$0xff] %v1144
        %1209 = vst [vmem:[%s250 + $0xd8] sm:$0xff] %v1145
        %1210 = vst [vmem:[%s250 + $0xe0] sm:$0xff] %v1146
        %1211 = vst [vmem:[%s250 + $0xe8] sm:$0xff] %v1147
        %1212 = vst [vmem:[%s250 + $0xf0] sm:$0xff] %v1148
        %1213 = vst [vmem:[%s250 + $0xf8] sm:$0xff] %v1149
        %1214 = vst [vmem:[%s250 + $0x100] sm:$0xff] %v1150
        %1215 = vst [vmem:[%s250 + $0x108] sm:$0xff] %v1151
        %1216 = vst [vmem:[%s250 + $0x110] sm:$0xff] %v1152
        %1217 = vst [vmem:[%s250 + $0x118] sm:$0xff] %v1153
        %1218 = vst [vmem:[%s250 + $0x120] sm:$0xff] %v1154
        %1219 = vst [vmem:[%s250 + $0x128] sm:$0xff] %v1155
        %1220 = vst [vmem:[%s250 + $0x130] sm:$0xff] %v1156
        %1221 = vst [vmem:[%s250 + $0x138] sm:$0xff] %v1157
        %1222 = vst [vmem:[%s250 + $0x140] sm:$0xff] %v1158
        %1223 = vst [vmem:[%s250 + $0x148] sm:$0xff] %v1159
        %1224 = vst [vmem:[%s250 + $0x150] sm:$0xff] %v1160
        %1225 = vst [vmem:[%s250 + $0x158] sm:$0xff] %v1161
        %1226 = vst [vmem:[%s250 + $0x160] sm:$0xff] %v1162
        %1227 = vst [vmem:[%s250 + $0x168] sm:$0xff] %v1163
        %1228 = vst [vmem:[%s250 + $0x170] sm:$0xff] %v1164
        %1229 = vst [vmem:[%s250 + $0x178] sm:$0xff] %v1165
        %1230 = vst [vmem:[%s250 + $0x180] sm:$0xff] %v1166
        %1231 = vst [vmem:[%s250 + $0x188] sm:$0xff] %v1167
        %1232 = vst [vmem:[%s250 + $0x190] sm:$0xff] %v1168
        %1233 = vst [vmem:[%s250 + $0x198] sm:$0xff] %v1169
        %1234 = vst [vmem:[%s250 + $0x1a0] sm:$0xff] %v1170
        %1235 = vst [vmem:[%s250 + $0x1a8] sm:$0xff] %v1171
        %1236 = vst [vmem:[%s250 + $0x1b0] sm:$0xff] %v1172
        %1237 = vst [vmem:[%s250 + $0x1b8] sm:$0xff] %v1173
        %1238 = vst [vmem:[%s250 + $0x1c0] sm:$0xff] %v1174
        %1239 = vst [vmem:[%s250 + $0x1c8] sm:$0xff] %v1175
        %1240 = vst [vmem:[%s250 + $0x1d0] sm:$0xff] %v1176
        %1241 = vst [vmem:[%s250 + $0x1d8] sm:$0xff] %v1177
        %1242 = vst [vmem:[%s250 + $0x1e0] sm:$0xff] %v1178
        %1243 = vst [vmem:[%s250 + $0x1e8] sm:$0xff] %v1179
        %1244 = vst [vmem:[%s250 + $0x1f0] sm:$0xff] %v1180
        %1245 = vst [vmem:[%s250 + $0x1f8] sm:$0xff] %v1181
        %s1246 = sand.u32 %s121, 1
        %s1247 = scalar_lea.sflag [#allocation4], %s1246
        %s1248 = sand.u32 %s121, 1
        %s1249 = smul.addr %s1248, 512
        %s1250 = scalar_lea.vmem [#allocation8], %s1249
        // Predicated region
        $region45: #{tpu_custom_call.1} parent=31 // pred_check
          %p1251 = pneg %p131
        $region46: #{tpu_custom_call.1} parent=31 // pred_check_branch
          %1253 = sbr.rel (%p1251) target = $region48
        $region47: #{tpu_custom_call.1} parent=31 // pred_region
          %s1254 = smul.u32 16, %s26
          %s1255 = smul.u32 4, %s25
          %1257 = vsyncadd %s1247, 0
          %s1258 = smul.addr %s1254, 4
          %s1259 = sadd.s32 %s1255, %s1258
          %s1260 = smul.addr %s1259, 8
          %s1261 = scalar_lea.hbm %s3, %s1260
          %s1262 = sshll.u32 %s1250, 4
          %s1263 = int_to_ptr.vmem [resolvable:$true] %s1262
          %s1264 = sshll.u32 %s1261, 4
          %s1265 = int_to_ptr.hbm [resolvable:$true] %s1264
          %1270 = dma.vmem_to_hbm [thread:$0]  %s1263, 8192, %s1265, %s1247, 512, 512, 32
        $region48: #{tpu_custom_call.1} parent=31 // pred_fallthru
          _
      $region32: #{tpu_custom_call.1} parent=5 // pred_fallthru
        _
      %p1271 = scmp.le.s32.totalorder 2, %s16
      // Predicated region
      $region49: #{tpu_custom_call.1} parent=5 // pred_check
        %p1272 = pneg %p1271
      $region50: #{tpu_custom_call.1} parent=5 // pred_check_branch
        %1274 = sbr.rel (%p1272) target = $region52
      $region51: #{tpu_custom_call.1} parent=5 // pred_region
        %s1275 = ssub.s32 %s16, 2
        // Predicated region
        $region53: #{tpu_custom_call.1} parent=51 // pred_check
          %p1276 = pneg %p137
        $region54: #{tpu_custom_call.1} parent=51 // pred_check_branch
          %1278 = sbr.rel (%p1276) target = $region56
        $region55: #{tpu_custom_call.1} parent=51 // pred_region
          %s1279 = sand.u32 %s122, 1
          %s1280 = scalar_lea.sflag [#allocation4], %s1279
          %s1281 = sand.u32 %s122, 1
          %s1282 = smul.addr %s1281, 512
          %s1283 = scalar_lea.vmem [#allocation8], %s1282
          %1285 = dma.done %s1280, 8192
        $region56: #{tpu_custom_call.1} parent=51 // pred_fallthru
          _
      $region52: #{tpu_custom_call.1} parent=5 // pred_fallthru
        _
    $region6: #{tpu_custom_call.1} parent=1 // loop_footer
      %s20 = sadd.s32 1, %s16
    $region7: #{tpu_custom_call.1} parent=1 // loop_footer_branch
      %15 = sbr.rel target = $region3
    $region8: #{tpu_custom_call.1} parent=1 // loop_exit
      _
    %1286 = vsyncpa [#allocation3], 1
    %s1287 = scalar_lea.sflag [#allocation3], 1
    %1288 = vsyncpa %s1287, 1
    %1289 = vsyncpa [#allocation6], 1
    %1290 = vsyncpa [#allocation4], 1
    %s1291 = scalar_lea.sflag [#allocation4], 1
    %1292 = vsyncpa %s1291, 1

</llo_original>
